<compile_context>
chip_gen: v7x
topology: tpu7x:2x2x1
jax: 0.10.0
libtpu: 0.0.40
codegen_flags: <defaults>
</compile_context>

<pallas_src>
import math
import functools

import jax
import jax.numpy as jnp
from jax.experimental import pallas as pl
from jax.experimental.pallas import tpu as pltpu


def _round_up(x, m):
    return (x + m - 1) // m * m


def mlm_head_kernel(x_ref, w1_ref, b1_ref, gamma_ref, beta_ref,
                    w2_ref, bias2_ref, out_ref, h_scratch, *, eps):
    j = pl.program_id(1)

    # Transform (dense -> gelu -> LayerNorm) computed once per row tile and
    # cached in VMEM scratch; reused for every vocab tile j.  Requires j to be
    # the inner, sequentially iterated ("arbitrary") grid axis.
    @pl.when(j == 0)
    def _():
        x = x_ref[...].astype(w1_ref.dtype)          # in-kernel cast (f32->bf16)
        h = jnp.dot(x, w1_ref[...], preferred_element_type=jnp.float32)
        h = h + b1_ref[...]                          # (tm, H), f32
        # exact (erf-based) gelu, matching the PyTorch `gelu` in the spec
        h = h * 0.5 * (1.0 + jax.lax.erf(h * (1.0 / math.sqrt(2.0))))
        # LayerNorm over last dim, statistics in f32
        mean = jnp.mean(h, axis=-1, keepdims=True)
        var = jnp.mean(jnp.square(h - mean), axis=-1, keepdims=True)
        h = (h - mean) * jax.lax.rsqrt(var + eps)
        h = h * gamma_ref[...] + beta_ref[...]
        h_scratch[...] = h.astype(h_scratch.dtype)

    # Decoder matmul for this vocab tile + external bias (f32 accumulation).
    out_ref[...] = (
        jnp.dot(h_scratch[...], w2_ref[...], preferred_element_type=jnp.float32)
        + bias2_ref[...]
    ).astype(out_ref.dtype)


def _default_min_row_tiles():
    # v7x has 2 TensorCores/chip: keep >= 2 row tiles so the "parallel" row
    # axis gives both cores work.  Single-core chips can take one big tile.
    try:
        kind = jax.devices()[0].device_kind.lower()
    except Exception:
        return 2
    return 2 if "v7" in kind else 1


def bert_only_mlm_head(sequence_output, params, *, eps=1e-12,
                       tm=None, tn=1024,
                       compute_dtype=jnp.bfloat16,
                       out_dtype=None,
                       min_row_tiles=None,
                       vmem_budget_bytes=32 * 1024 * 1024):
    """sequence_output: [B, S, H] -> logits [B, S, V].

    out_dtype defaults to compute_dtype (bf16 logits halve the dominant HBM
    write stream); pass out_dtype=jnp.float32 for full-precision logits.
    """
    B, S, H = sequence_output.shape
    w1, b1, gamma, beta, w2, bias2 = params
    V = w2.shape[1]
    N = B * S

    if out_dtype is None:
        out_dtype = compute_dtype
    if min_row_tiles is None:
        min_row_tiles = _default_min_row_tiles()

    x_item = jnp.dtype(sequence_output.dtype).itemsize
    cd_item = jnp.dtype(compute_dtype).itemsize
    out_item = jnp.dtype(out_dtype).itemsize

    # Lane (vocab) tile: multiple of 128, clamped to the padded vocab.
    tn = max(128, min(int(tn), _round_up(V, 128)))
    tn = _round_up(tn, 128)

    # Row alignment: 16 covers bf16 sublane packing (8 would do for f32).
    row_align = 16

    # VMEM footprint model (bytes):
    #   fixed  : w1 (x1) + b1/gamma/beta + W2 tile (x w2_bufs) + bias2 tile (x2)
    #   per-row: x tile (x2) + h_scratch (x1) + out tile (x2)
    w2_bufs = 3
    fixed = (1 * H * H * cd_item
             + 3 * 8 * _round_up(H, 128) * 4
             + w2_bufs * H * tn * cd_item
             + 2 * 8 * _round_up(tn, 128) * 4)
    per_row = 2 * H * x_item + H * cd_item + 2 * tn * out_item

    if tm is None:
        tm_budget = max((vmem_budget_bytes - fixed) // per_row, row_align)
        tm_budget = max((tm_budget // row_align) * row_align, row_align)
        rows_per_shard = _round_up(pl.cdiv(N, max(int(min_row_tiles), 1)),
                                   row_align)
        tm = int(max(min(tm_budget, rows_per_shard), row_align))
    else:
        tm = int(max(_round_up(min(int(tm), _round_up(N, row_align)),
                               row_align), row_align))

    N_pad = _round_up(N, tm)
    V_pad = _round_up(V, tn)
    grid = (N_pad // tm, V_pad // tn)

    # Inputs.  x keeps its own dtype (cast happens in-kernel at j == 0);
    # weights go to the compute dtype once (no-op if already there).
    x = sequence_output.reshape(N, H)
    if N_pad != N:
        x = jnp.pad(x, ((0, N_pad - N), (0, 0)))
    w1_c = w1 if w1.dtype == compute_dtype else w1.astype(compute_dtype)
    w2_c = w2 if w2.dtype == compute_dtype else w2.astype(compute_dtype)
    bias2_p = bias2.astype(jnp.float32)
    if V_pad != V:
        w2_c = jnp.pad(w2_c, ((0, 0), (0, V_pad - V)))
        bias2_p = jnp.pad(bias2_p, ((0, V_pad - V),))

    b1_2d = b1.reshape(1, H).astype(jnp.float32)
    gamma_2d = gamma.reshape(1, H).astype(jnp.float32)
    beta_2d = beta.reshape(1, H).astype(jnp.float32)
    bias2_2d = bias2_p.reshape(1, V_pad)

    # Right-sized scoped VMEM limit (well under v7x's 64 MiB physical VMEM for
    # the default budget), with headroom for compiler-internal scratch.
    vmem_used = fixed + tm * per_row
    vmem_limit = int(min(max(int(vmem_used * 1.25) + (4 << 20), 16 << 20),
                         100 << 20))

    cost = pl.CostEstimate(
        flops=2 * N_pad * H * H + 2 * N_pad * H * V_pad,
        transcendentals=N_pad * H,
        bytes_accessed=(N_pad * H * x_item                 # x
                        + H * H * cd_item                  # w1 (resident)
                        + H * V_pad * cd_item * grid[0]    # W2 restreamed per row tile
                        + N_pad * V_pad * out_item),       # logits write
    )

    kernel = functools.partial(mlm_head_kernel, eps=eps)

    def make_spec(shape, index_map, bufs, use_buffered):
        if use_buffered and bufs is not None and hasattr(pl, "Buffered"):
            try:
                return pl.BlockSpec(shape, index_map,
                                    pipeline_mode=pl.Buffered(bufs))
            except TypeError:
                pass
        return pl.BlockSpec(shape, index_map)

    def run(use_buffered):
        in_specs = [
            make_spec((tm, H), lambda i, j: (i, 0), None, use_buffered),    # x rows
            make_spec((H, H), lambda i, j: (0, 0), 1, use_buffered),        # dense W (const)
            make_spec((1, H), lambda i, j: (0, 0), 1, use_buffered),        # dense b (const)
            make_spec((1, H), lambda i, j: (0, 0), 1, use_buffered),        # LN gamma (const)
            make_spec((1, H), lambda i, j: (0, 0), 1, use_buffered),        # LN beta (const)
            make_spec((H, tn), lambda i, j: (0, j), w2_bufs, use_buffered),  # decoder W tile
            make_spec((1, tn), lambda i, j: (0, j), None, use_buffered),    # decoder bias tile
        ]
        return pl.pallas_call(
            kernel,
            out_shape=jax.ShapeDtypeStruct((N_pad, V_pad), out_dtype),
            grid_spec=pltpu.PrefetchScalarGridSpec(
                num_scalar_prefetch=0,
                grid=grid,
                in_specs=in_specs,
                out_specs=pl.BlockSpec((tm, tn), lambda i, j: (i, j)),
                scratch_shapes=[pltpu.VMEM((tm, H), compute_dtype)],
            ),
            compiler_params=pltpu.CompilerParams(
                # rows (i) parallel -> megacore-shardable; vocab axis (j) MUST
                # stay "arbitrary" (inner, sequential) for the h_scratch reuse.
                dimension_semantics=("parallel", "arbitrary"),
                vmem_limit_bytes=vmem_limit,
            ),
            cost_estimate=cost,
        )(x, w1_c, b1_2d, gamma_2d, beta_2d, w2_c, bias2_2d)

    if hasattr(pl, "Buffered"):
        try:
            out = run(True)
        except Exception:
            # Conservative fallback if pipeline_mode=Buffered cannot be lowered
            # on this JAX / libtpu combination.
            out = run(False)
    else:
        out = run(False)

    return out[:N, :V].reshape(B, S, V)


def reference(sequence_output, params, eps=1e-12):
    w1, b1, gamma, beta, w2, bias2 = params
    h = sequence_output @ w1 + b1
    h = h * 0.5 * (1.0 + jax.lax.erf(h / math.sqrt(2.0)))
    mean = jnp.mean(h, axis=-1, keepdims=True)
    var = jnp.mean((h - mean) ** 2, axis=-1, keepdims=True)
    h = (h - mean) / jnp.sqrt(var + eps) * gamma + beta
    return h @ w2 + bias2


if __name__ == "__main__":
    # config: hidden_size=128, vocab_size=320 (NOT a tile multiple -> padding
    # path), layer_norm_eps=1e-12
    B, S, H, V = 2, 40, 128, 320

    key = jax.random.PRNGKey(0)
    k0, k1, k2, k3 = jax.random.split(key, 4)

    x = jax.random.normal(k0, (B, S, H), dtype=jnp.float32)

    # nn.Linear stores weight as (out, in); pre-transpose to (in, out) for x @ W.
    dense_w = jax.random.normal(k1, (H, H), dtype=jnp.float32) * 0.02
    dense_b = jax.random.normal(k2, (H,), dtype=jnp.float32) * 0.02
    ln_gamma = jnp.ones((H,), dtype=jnp.float32)
    ln_beta = jnp.zeros((H,), dtype=jnp.float32)
    dec_w = jax.random.normal(k3, (V, H), dtype=jnp.float32) * 0.02
    dec_bias = jnp.zeros((V,), dtype=jnp.float32)   # BertLMPredictionHead.bias init

    params = (dense_w.T, dense_b, ln_gamma, ln_beta, dec_w.T, dec_bias)

    ref = reference(x, params)

    # 1) Exact mode: f32 compute + f32 logits, small explicit tiles
    #    (exercises multi-tile grid + row/vocab padding).
    out_f32 = bert_only_mlm_head(x, params, tm=32, tn=128,
                                 compute_dtype=jnp.float32,
                                 out_dtype=jnp.float32)
    out_f32 = jax.block_until_ready(out_f32)
    assert out_f32.shape == (B, S, V) and out_f32.dtype == jnp.float32
    assert jnp.allclose(out_f32, ref, atol=2e-3, rtol=2e-3), \
        "f32 kernel mismatch vs reference"

    # 2) Default perf mode: bf16 matmul inputs + bf16 logits, auto-sized large
    #    tiles (W2 streamed once/twice), looser tolerance for bf16.
    out_perf = bert_only_mlm_head(x, params)
    out_perf = jax.block_until_ready(out_perf)
    assert out_perf.shape == (B, S, V)
    assert jnp.allclose(out_perf.astype(jnp.float32), ref,
                        atol=3e-2, rtol=3e-2), \
        "bf16 kernel mismatch vs reference"

    print("KERNEL_OK")
</pallas_src>

<mosaic_0001>
module attributes {stable_mosaic.version = 11 : i64} {
  func.func @mlm_head_kernel(%arg0: i32, %arg1: i32, %arg2: memref<32x128xf32, #tpu.memory_space<vmem>>, %arg3: memref<128x128xf32, #tpu.memory_space<vmem>>, %arg4: memref<1x128xf32, #tpu.memory_space<vmem>>, %arg5: memref<1x128xf32, #tpu.memory_space<vmem>>, %arg6: memref<1x128xf32, #tpu.memory_space<vmem>>, %arg7: memref<128x128xf32, #tpu.memory_space<vmem>>, %arg8: memref<1x128xf32, #tpu.memory_space<vmem>>, %arg9: memref<32x128xf32, #tpu.memory_space<vmem>>, %arg10: memref<32x128xf32, #tpu.memory_space<vmem>>) attributes {dimension_semantics = [#tpu.dimension_semantics<parallel>, #tpu.dimension_semantics<arbitrary>], iteration_bounds = array<i64: 3, 3>, scalar_prefetch = 0 : i64, scratch_operands = 1 : i64, tpu.core_type = #tpu.core_type<tc>, window_params = [{transform_indices = @transform_0, window_bounds = array<i64: 32, 128>}, {pipeline_mode = #tpu.pipeline_mode<synchronous>, transform_indices = @transform_1, window_bounds = array<i64: 128, 128>}, {pipeline_mode = #tpu.pipeline_mode<synchronous>, transform_indices = @transform_2, window_bounds = array<i64: 1, 128>}, {pipeline_mode = #tpu.pipeline_mode<synchronous>, transform_indices = @transform_3, window_bounds = array<i64: 1, 128>}, {pipeline_mode = #tpu.pipeline_mode<synchronous>, transform_indices = @transform_4, window_bounds = array<i64: 1, 128>}, {transform_indices = @transform_5, window_bounds = array<i64: 128, 128>}, {transform_indices = @transform_6, window_bounds = array<i64: 1, 128>}, {transform_indices = @transform_7, window_bounds = array<i64: 32, 128>}]} {
    %c0_i32 = arith.constant 0 : i32
    %0 = arith.cmpi eq, %arg1, %c0_i32 : i32
    %1 = arith.extui %0 : i1 to i32
    %c0_i32_0 = arith.constant 0 : i32
    %2 = arith.cmpi ne, %1, %c0_i32_0 : i32
    scf.if %2 {
      %c0_8 = arith.constant 0 : index
      %c0_9 = arith.constant 0 : index
      %10 = vector.load %arg2[%c0_8, %c0_9] : memref<32x128xf32, #tpu.memory_space<vmem>>, vector<32x128xf32>
      %c0_10 = arith.constant 0 : index
      %c0_11 = arith.constant 0 : index
      %11 = vector.load %arg3[%c0_10, %c0_11] : memref<128x128xf32, #tpu.memory_space<vmem>>, vector<128x128xf32>
      %cst_12 = arith.constant dense<0.000000e+00> : vector<32x128xf32>
      %12 = tpu.matmul %10, %11, %cst_12 {dimension_numbers = #tpu.dot_dimension_numbers<[1], [0], [0], [1], [0, 0, 1, 1], [], []>} : vector<32x128xf32>, vector<128x128xf32>, vector<32x128xf32> -> vector<32x128xf32>
      %c0_13 = arith.constant 0 : index
      %c0_14 = arith.constant 0 : index
      %13 = vector.load %arg4[%c0_13, %c0_14] : memref<1x128xf32, #tpu.memory_space<vmem>>, vector<1x128xf32>
      %14 = vector.broadcast %13 : vector<1x128xf32> to vector<32x128xf32>
      %15 = arith.addf %12, %14 : vector<32x128xf32>
      %cst_15 = arith.constant 5.000000e-01 : f32
      %16 = vector.broadcast %cst_15 : f32 to vector<32x128xf32>
      %17 = arith.mulf %15, %16 : vector<32x128xf32>
      %cst_16 = arith.constant 0.707106769 : f32
      %18 = vector.broadcast %cst_16 : f32 to vector<32x128xf32>
      %19 = arith.mulf %15, %18 : vector<32x128xf32>
      %20 = math.erf %19 : vector<32x128xf32>
      %cst_17 = arith.constant 1.000000e+00 : f32
      %21 = vector.broadcast %cst_17 : f32 to vector<32x128xf32>
      %22 = arith.addf %21, %20 : vector<32x128xf32>
      %23 = arith.mulf %17, %22 : vector<32x128xf32>
      %cst_18 = arith.constant dense<0.000000e+00> : vector<32xf32>
      %24 = vector.multi_reduction <add>, %23, %cst_18 [1] : vector<32x128xf32> to vector<32xf32>
      %25 = vector.shape_cast %24 : vector<32xf32> to vector<32x1xf32>
      %cst_19 = arith.constant 1.280000e+02 : f32
      %26 = vector.broadcast %cst_19 : f32 to vector<32x1xf32>
      %27 = arith.divf %25, %26 : vector<32x1xf32>
      %28 = vector.broadcast %27 : vector<32x1xf32> to vector<32x128xf32>
      %29 = arith.subf %23, %28 : vector<32x128xf32>
      %30 = arith.mulf %29, %29 : vector<32x128xf32>
      %cst_20 = arith.constant dense<0.000000e+00> : vector<32xf32>
      %31 = vector.multi_reduction <add>, %30, %cst_20 [1] : vector<32x128xf32> to vector<32xf32>
      %32 = vector.shape_cast %31 : vector<32xf32> to vector<32x1xf32>
      %cst_21 = arith.constant 1.280000e+02 : f32
      %33 = vector.broadcast %cst_21 : f32 to vector<32x1xf32>
      %34 = arith.divf %32, %33 : vector<32x1xf32>
      %35 = vector.broadcast %27 : vector<32x1xf32> to vector<32x128xf32>
      %36 = arith.subf %23, %35 : vector<32x128xf32>
      %cst_22 = arith.constant 9.99999996E-13 : f32
      %37 = vector.broadcast %cst_22 : f32 to vector<32x1xf32>
      %38 = arith.addf %34, %37 : vector<32x1xf32>
      %39 = math.rsqrt %38 : vector<32x1xf32>
      %40 = vector.broadcast %39 : vector<32x1xf32> to vector<32x128xf32>
      %41 = arith.mulf %36, %40 : vector<32x128xf32>
      %c0_23 = arith.constant 0 : index
      %c0_24 = arith.constant 0 : index
      %42 = vector.load %arg5[%c0_23, %c0_24] : memref<1x128xf32, #tpu.memory_space<vmem>>, vector<1x128xf32>
      %43 = vector.broadcast %42 : vector<1x128xf32> to vector<32x128xf32>
      %44 = arith.mulf %41, %43 : vector<32x128xf32>
      %c0_25 = arith.constant 0 : index
      %c0_26 = arith.constant 0 : index
      %45 = vector.load %arg6[%c0_25, %c0_26] : memref<1x128xf32, #tpu.memory_space<vmem>>, vector<1x128xf32>
      %46 = vector.broadcast %45 : vector<1x128xf32> to vector<32x128xf32>
      %47 = arith.addf %44, %46 : vector<32x128xf32>
      %c0_27 = arith.constant 0 : index
      %c0_28 = arith.constant 0 : index
      %48 = vector.load %arg10[%c0_27, %c0_28] : memref<32x128xf32, #tpu.memory_space<vmem>>, vector<32x128xf32>
      tpu.vector_store %arg10[%c0_27, %c0_28], %47 {strides = array<i32>} : memref<32x128xf32, #tpu.memory_space<vmem>>, vector<32x128xf32>,
    } else {
    }
    %c0 = arith.constant 0 : index
    %c0_1 = arith.constant 0 : index
    %3 = vector.load %arg10[%c0, %c0_1] : memref<32x128xf32, #tpu.memory_space<vmem>>, vector<32x128xf32>
    %c0_2 = arith.constant 0 : index
    %c0_3 = arith.constant 0 : index
    %4 = vector.load %arg7[%c0_2, %c0_3] : memref<128x128xf32, #tpu.memory_space<vmem>>, vector<128x128xf32>
    %cst = arith.constant dense<0.000000e+00> : vector<32x128xf32>
    %5 = tpu.matmul %3, %4, %cst {dimension_numbers = #tpu.dot_dimension_numbers<[1], [0], [0], [1], [0, 0, 1, 1], [], []>} : vector<32x128xf32>, vector<128x128xf32>, vector<32x128xf32> -> vector<32x128xf32>
    %c0_4 = arith.constant 0 : index
    %c0_5 = arith.constant 0 : index
    %6 = vector.load %arg8[%c0_4, %c0_5] : memref<1x128xf32, #tpu.memory_space<vmem>>, vector<1x128xf32>
    %7 = vector.broadcast %6 : vector<1x128xf32> to vector<32x128xf32>
    %8 = arith.addf %5, %7 : vector<32x128xf32>
    %c0_6 = arith.constant 0 : index
    %c0_7 = arith.constant 0 : index
    %9 = vector.load %arg9[%c0_6, %c0_7] : memref<32x128xf32, #tpu.memory_space<vmem>>, vector<32x128xf32>
    tpu.vector_store %arg9[%c0_6, %c0_7], %8 {strides = array<i32>} : memref<32x128xf32, #tpu.memory_space<vmem>>, vector<32x128xf32>,
    return
  }
  func.func @transform_0(%arg0: i32, %arg1: i32) -> (i32, i32) {
    %c0_i32 = arith.constant 0 : i32
    %c0_i32_0 = arith.constant 0 : i32
    return %arg0, %c0_i32 : i32, i32
  }
  func.func @transform_1(%arg0: i32, %arg1: i32) -> (i32, i32) {
    %c0_i32 = arith.constant 0 : i32
    %c0_i32_0 = arith.constant 0 : i32
    %c0_i32_1 = arith.constant 0 : i32
    return %c0_i32, %c0_i32_0 : i32, i32
  }
  func.func @transform_2(%arg0: i32, %arg1: i32) -> (i32, i32) {
    %c0_i32 = arith.constant 0 : i32
    %c0_i32_0 = arith.constant 0 : i32
    %c0_i32_1 = arith.constant 0 : i32
    return %c0_i32, %c0_i32_0 : i32, i32
  }
  func.func @transform_3(%arg0: i32, %arg1: i32) -> (i32, i32) {
    %c0_i32 = arith.constant 0 : i32
    %c0_i32_0 = arith.constant 0 : i32
    %c0_i32_1 = arith.constant 0 : i32
    return %c0_i32, %c0_i32_0 : i32, i32
  }
  func.func @transform_4(%arg0: i32, %arg1: i32) -> (i32, i32) {
    %c0_i32 = arith.constant 0 : i32
    %c0_i32_0 = arith.constant 0 : i32
    %c0_i32_1 = arith.constant 0 : i32
    return %c0_i32, %c0_i32_0 : i32, i32
  }
  func.func @transform_5(%arg0: i32, %arg1: i32) -> (i32, i32) {
    %c0_i32 = arith.constant 0 : i32
    %c0_i32_0 = arith.constant 0 : i32
    return %c0_i32, %arg1 : i32, i32
  }
  func.func @transform_6(%arg0: i32, %arg1: i32) -> (i32, i32) {
    %c0_i32 = arith.constant 0 : i32
    %c0_i32_0 = arith.constant 0 : i32
    return %c0_i32, %arg1 : i32, i32
  }
  func.func @transform_7(%arg0: i32, %arg1: i32) -> (i32, i32) {
    %c0_i32 = arith.constant 0 : i32
    return %arg0, %arg1 : i32, i32
  }
}

</mosaic_0001>

<llo_original>
// kernel: tpu_custom_call.1
$region0: #{tpu_custom_call.1}
  #allocation0 [shape = 'u32[]', space=smem, size = 0x4, offset = 0x4, fixed_abs, tag = 'smem constant byte address 0x4 - core index']
  #allocation1 [shape = 'u32[144,128]{1,0:T(1,128)}', space=vmem, size = 0x12000, scoped, tag = 'internal scratch']
  #allocation2 [shape = 'f32[32,128]{1,0:T(8,128)}', space=vmem, size = 0x4000, scoped, tag = 'scratch operand']
  %s0 = inlined_call_operand.hbm [shape: f32[96,128], index: 0, kind: input, shape index: {}]
  %s1 = inlined_call_operand.hbm [shape: f32[128,128], index: 1, kind: input, shape index: {}]
  %s2 = inlined_call_operand.vmem [shape: f32[1,128], index: 2, kind: input, shape index: {}]
  %s3 = inlined_call_operand.vmem [shape: f32[1,128], index: 3, kind: input, shape index: {}]
  %s4 = inlined_call_operand.vmem [shape: f32[1,128], index: 4, kind: input, shape index: {}]
  %s5 = inlined_call_operand.hbm [shape: f32[128,384], index: 5, kind: input, shape index: {}]
  %s6 = inlined_call_operand.vmem [shape: f32[1,384], index: 6, kind: input, shape index: {}]
  %s7 = inlined_call_operand.hbm [shape: f32[96,384], index: 7, kind: output, shape index: {}]
  %s8 = sld [smem:[#allocation0]]
  $region77: #{tpu_custom_call.1} parent=0
    _
  %s10 = ssub.s32 1, %s8
  %s11 = scalar_select 0, %s10, %s8
  $region1: #{tpu_custom_call.1} parent=0
    #allocation3 [shape = 'u8[32768]{0}', space=vmem, size = 0x8000, scoped, tag = 'input window, operand 0']
    #allocation4 [shape = 's32[2]{0}', space=sflag, size = 0x8, scoped, tag = 'scoped memory for tpu_custom_call.1']
    #allocation5 [shape = 's32[2]{0}', space=sflag, size = 0x8, scoped, tag = 'scoped memory for tpu_custom_call.1']
    #allocation6 [shape = 'u8[65536]{0}', space=vmem, size = 0x10000, scoped, tag = 'input window, operand 1, single buffered']
    #allocation7 [shape = 's32[1]{0}', space=sflag, size = 0x4, scoped, tag = 'scoped memory for tpu_custom_call.1']
    #allocation8 [shape = 'u8[131072]{0}', space=vmem, size = 0x20000, scoped, tag = 'input window, operand 5']
    #allocation9 [shape = 'u8[32768]{0}', space=vmem, size = 0x8000, scoped, tag = 'output window, operand 0']
    %12 = vsyncpa [#allocation4], 0
    %s13 = scalar_lea.sflag [#allocation4], 1
    %14 = vsyncpa %s13, 0
    %15 = vsyncpa [#allocation7], 0
    %16 = vsyncpa [#allocation5], 0
    %s17 = scalar_lea.sflag [#allocation5], 1
    %18 = vsyncpa %s17, 0
    loop: start=0, step=1, limit=11
    $region2: #{tpu_custom_call.1} parent=1 // loop_pre_header
      _
    $region3: #{tpu_custom_call.1} parent=1 // loop_header
      %s20 = sphi 0, %s24
      %p21 = scmp.ge.s32.totalorder %s20, 11
      %s27 = sphi 0, %s39
      %s28 = sphi 0, %s35
      %s29 = sphi 0, %s27
      %s30 = sphi 0, %s28
      %s31 = sphi 0, %s29
      %s32 = sphi 0, %s30
      %s42 = sphi 0, %s44
      %s45 = sphi 0, %s42
      %s46 = sphi 0, %s45
      %s62 = sphi 0, %s46
      %s66 = sphi 0, %s66
      %s68 = sphi 0, %s66
      %s69 = sphi 0, %s68
      %s83 = sphi 0, %s69
      %s87 = sphi 0, %s87
      %s89 = sphi 0, %s87
      %s90 = sphi 0, %s89
      %s104 = sphi 0, %s90
      %s108 = sphi 0, %s108
      %s110 = sphi 0, %s108
      %s111 = sphi 0, %s110
      %s125 = sphi 0, %s111
      %s129 = sphi 0, %s129
      %s131 = sphi 0, %s129
      %s132 = sphi 0, %s131
      %s146 = sphi 0, %s132
      %s152 = sphi 0, %s154
      %s155 = sphi 0, %s152
      %s156 = sphi 0, %s155
      %s172 = sphi 0, %s156
      %s178 = sphi 0, %s180
      %s181 = sphi 0, %s178
      %s182 = sphi 0, %s181
      %s198 = sphi 0, %s182
      %s206 = sphi 0, %s208
      %s209 = sphi 0, %s206
      %s210 = sphi 0, %s209
      %s226 = sphi 0, %s210
    $region4: #{tpu_custom_call.1} parent=1 // loop_header_branch
      %23 = sbr.rel (%p21) target = $region8
    $region5: #{tpu_custom_call.1} parent=1 // loop_body
      %s25 = ssub.s32 %s20, 1
      %s26 = ssub.s32 %s20, 2
      %s33 = sadd.s32 1, %s28
      %p34 = scmp.ge.s32.totalorder %s33, 3
      %s35 = scalar_select %p34, 0, %s33
      %s36 = sadd.s32 1, %s27
      %s37 = scalar_select %p34, %s36, %s27
      %p38 = scmp.ge.s32.totalorder %s37, 3
      %s39 = scalar_select %p38, 0, %s37
      %s40 = ssub.s32 %s27, %s39
      %p41 = scmp.eq.s32.totalorder %s40, 0
      %s43 = sadd.s32 %s42, 1
      %s44 = scalar_select %p41, %s42, %s43
      %p47 = pneg %p41
      %p48 = scmp.eq.s32.totalorder %s20, 8
      %p49 = por %p47, %p48
      %p50 = scmp.ne.s32.totalorder %s42, %s45
      %p51 = scmp.eq.s32.totalorder %s20, 0
      %p52 = por %p50, %p51
      %p53 = scmp.ne.s32.totalorder %s42, %s45
      %p54 = scmp.eq.s32.totalorder %s25, 8
      %p55 = por %p53, %p54
      %p56 = scmp.ne.s32.totalorder %s45, %s46
      %p57 = scmp.eq.s32.totalorder %s25, 0
      %p58 = por %p56, %p57
      %p59 = scmp.ne.s32.totalorder %s45, %s46
      %p60 = scmp.eq.s32.totalorder %s26, 8
      %p61 = por %p59, %p60
      %p63 = scmp.ne.s32.totalorder %s46, %s62
      %p64 = scmp.eq.s32.totalorder %s26, 0
      %p65 = por %p63, %p64
      %s67 = sadd.s32 %s66, 1
      %p70 = scmp.eq.s32.totalorder %s20, 8
      %p71 = scmp.ne.s32.totalorder %s66, %s68
      %p72 = scmp.eq.s32.totalorder %s20, 0
      %p73 = por %p71, %p72
      %p74 = scmp.ne.s32.totalorder %s66, %s68
      %p75 = scmp.eq.s32.totalorder %s25, 8
      %p76 = por %p74, %p75
      %p77 = scmp.ne.s32.totalorder %s68, %s69
      %p78 = scmp.eq.s32.totalorder %s25, 0
      %p79 = por %p77, %p78
      %p80 = scmp.ne.s32.totalorder %s68, %s69
      %p81 = scmp.eq.s32.totalorder %s26, 8
      %p82 = por %p80, %p81
      %p84 = scmp.ne.s32.totalorder %s69, %s83
      %p85 = scmp.eq.s32.totalorder %s26, 0
      %p86 = por %p84, %p85
      %s88 = sadd.s32 %s87, 1
      %p91 = scmp.eq.s32.totalorder %s20, 8
      %p92 = scmp.ne.s32.totalorder %s87, %s89
      %p93 = scmp.eq.s32.totalorder %s20, 0
      %p94 = por %p92, %p93
      %p95 = scmp.ne.s32.totalorder %s87, %s89
      %p96 = scmp.eq.s32.totalorder %s25, 8
      %p97 = por %p95, %p96
      %p98 = scmp.ne.s32.totalorder %s89, %s90
      %p99 = scmp.eq.s32.totalorder %s25, 0
      %p100 = por %p98, %p99
      %p101 = scmp.ne.s32.totalorder %s89, %s90
      %p102 = scmp.eq.s32.totalorder %s26, 8
      %p103 = por %p101, %p102
      %p105 = scmp.ne.s32.totalorder %s90, %s104
      %p106 = scmp.eq.s32.totalorder %s26, 0
      %p107 = por %p105, %p106
      %s109 = sadd.s32 %s108, 1
      %p112 = scmp.eq.s32.totalorder %s20, 8
      %p113 = scmp.ne.s32.totalorder %s108, %s110
      %p114 = scmp.eq.s32.totalorder %s20, 0
      %p115 = por %p113, %p114
      %p116 = scmp.ne.s32.totalorder %s108, %s110
      %p117 = scmp.eq.s32.totalorder %s25, 8
      %p118 = por %p116, %p117
      %p119 = scmp.ne.s32.totalorder %s110, %s111
      %p120 = scmp.eq.s32.totalorder %s25, 0
      %p121 = por %p119, %p120
      %p122 = scmp.ne.s32.totalorder %s110, %s111
      %p123 = scmp.eq.s32.totalorder %s26, 8
      %p124 = por %p122, %p123
      %p126 = scmp.ne.s32.totalorder %s111, %s125
      %p127 = scmp.eq.s32.totalorder %s26, 0
      %p128 = por %p126, %p127
      %s130 = sadd.s32 %s129, 1
      %p133 = scmp.eq.s32.totalorder %s20, 8
      %p134 = scmp.ne.s32.totalorder %s129, %s131
      %p135 = scmp.eq.s32.totalorder %s20, 0
      %p136 = por %p134, %p135
      %p137 = scmp.ne.s32.totalorder %s129, %s131
      %p138 = scmp.eq.s32.totalorder %s25, 8
      %p139 = por %p137, %p138
      %p140 = scmp.ne.s32.totalorder %s131, %s132
      %p141 = scmp.eq.s32.totalorder %s25, 0
      %p142 = por %p140, %p141
      %p143 = scmp.ne.s32.totalorder %s131, %s132
      %p144 = scmp.eq.s32.totalorder %s26, 8
      %p145 = por %p143, %p144
      %p147 = scmp.ne.s32.totalorder %s132, %s146
      %p148 = scmp.eq.s32.totalorder %s26, 0
      %p149 = por %p147, %p148
      %s150 = ssub.s32 %s28, %s35
      %p151 = scmp.eq.s32.totalorder %s150, 0
      %s153 = sadd.s32 %s152, 1
      %s154 = scalar_select %p151, %s152, %s153
      %p157 = pneg %p151
      %p158 = scmp.eq.s32.totalorder %s20, 8
      %p159 = por %p157, %p158
      %p160 = scmp.ne.s32.totalorder %s152, %s155
      %p161 = scmp.eq.s32.totalorder %s20, 0
      %p162 = por %p160, %p161
      %p163 = scmp.ne.s32.totalorder %s152, %s155
      %p164 = scmp.eq.s32.totalorder %s25, 8
      %p165 = por %p163, %p164
      %p166 = scmp.ne.s32.totalorder %s155, %s156
      %p167 = scmp.eq.s32.totalorder %s25, 0
      %p168 = por %p166, %p167
      %p169 = scmp.ne.s32.totalorder %s155, %s156
      %p170 = scmp.eq.s32.totalorder %s26, 8
      %p171 = por %p169, %p170
      %p173 = scmp.ne.s32.totalorder %s156, %s172
      %p174 = scmp.eq.s32.totalorder %s26, 0
      %p175 = por %p173, %p174
      %s176 = ssub.s32 %s28, %s35
      %p177 = scmp.eq.s32.totalorder %s176, 0
      %s179 = sadd.s32 %s178, 1
      %s180 = scalar_select %p177, %s178, %s179
      %p183 = pneg %p177
      %p184 = scmp.eq.s32.totalorder %s20, 8
      %p185 = por %p183, %p184
      %p186 = scmp.ne.s32.totalorder %s178, %s181
      %p187 = scmp.eq.s32.totalorder %s20, 0
      %p188 = por %p186, %p187
      %p189 = scmp.ne.s32.totalorder %s178, %s181
      %p190 = scmp.eq.s32.totalorder %s25, 8
      %p191 = por %p189, %p190
      %p192 = scmp.ne.s32.totalorder %s181, %s182
      %p193 = scmp.eq.s32.totalorder %s25, 0
      %p194 = por %p192, %p193
      %p195 = scmp.ne.s32.totalorder %s181, %s182
      %p196 = scmp.eq.s32.totalorder %s26, 8
      %p197 = por %p195, %p196
      %p199 = scmp.ne.s32.totalorder %s182, %s198
      %p200 = scmp.eq.s32.totalorder %s26, 0
      %p201 = por %p199, %p200
      %s202 = ssub.s32 %s27, %s39
      %s203 = ssub.s32 %s28, %s35
      %s204 = sor.u32 %s202, %s203
      %p205 = scmp.eq.s32.totalorder %s204, 0
      %s207 = sadd.s32 %s206, 1
      %s208 = scalar_select %p205, %s206, %s207
      %p211 = pneg %p205
      %p212 = scmp.eq.s32.totalorder %s20, 8
      %p213 = por %p211, %p212
      %p214 = scmp.ne.s32.totalorder %s206, %s209
      %p215 = scmp.eq.s32.totalorder %s20, 0
      %p216 = por %p214, %p215
      %p217 = scmp.ne.s32.totalorder %s206, %s209
      %p218 = scmp.eq.s32.totalorder %s25, 8
      %p219 = por %p217, %p218
      %p220 = scmp.ne.s32.totalorder %s209, %s210
      %p221 = scmp.eq.s32.totalorder %s25, 0
      %p222 = por %p220, %p221
      %p223 = scmp.ne.s32.totalorder %s209, %s210
      %p224 = scmp.eq.s32.totalorder %s26, 8
      %p225 = por %p223, %p224
      %p227 = scmp.ne.s32.totalorder %s210, %s226
      %p228 = scmp.eq.s32.totalorder %s26, 0
      %p229 = por %p227, %p228
      %p230 = scmp.le.s32.totalorder 1, %s20
      %p231 = scmp.lt.s32.totalorder %s20, 10
      %p232 = pnand %p230, %p231
      %p233 = pneg %p232
      // Predicated region
      $region9: #{tpu_custom_call.1} parent=5 // pred_check
        _
      $region10: #{tpu_custom_call.1} parent=5 // pred_check_branch
        %235 = sbr.rel (%p232) target = $region12
      $region11: #{tpu_custom_call.1} parent=5 // pred_region
        %s236 = ssub.s32 %s20, 1
        // Predicated region
        $region13: #{tpu_custom_call.1} parent=11 // pred_check
          %p237 = pneg %p79
        $region14: #{tpu_custom_call.1} parent=11 // pred_check_branch
          %239 = sbr.rel (%p237) target = $region16
        $region15: #{tpu_custom_call.1} parent=11 // pred_region
          %s241 = ssub.s32 2048, 2048
          %242 = vsyncadd [#allocation7], %s241
          %s243 = sshll.u32 [#allocation6], 4
          %s244 = int_to_ptr.vmem [resolvable:$true] %s243
          %249 = dma.hbm_to_vmem [thread:$0]  %s1, 2048, %s244, [#allocation7], 128, 128, 8
        $region16: #{tpu_custom_call.1} parent=11 // pred_fallthru
          _
        // Predicated region
        $region17: #{tpu_custom_call.1} parent=11 // pred_check
          %p250 = pneg %p100
        $region18: #{tpu_custom_call.1} parent=11 // pred_check_branch
          %252 = sbr.rel (%p250) target = $region20
        $region19: #{tpu_custom_call.1} parent=11 // pred_region
          _
        $region20: #{tpu_custom_call.1} parent=11 // pred_fallthru
          _
        // Predicated region
        $region21: #{tpu_custom_call.1} parent=11 // pred_check
          %p253 = pneg %p121
        $region22: #{tpu_custom_call.1} parent=11 // pred_check_branch
          %255 = sbr.rel (%p253) target = $region24
        $region23: #{tpu_custom_call.1} parent=11 // pred_region
          _
        $region24: #{tpu_custom_call.1} parent=11 // pred_fallthru
          _
        // Predicated region
        $region25: #{tpu_custom_call.1} parent=11 // pred_check
          %p256 = pneg %p142
        $region26: #{tpu_custom_call.1} parent=11 // pred_check_branch
          %258 = sbr.rel (%p256) target = $region28
        $region27: #{tpu_custom_call.1} parent=11 // pred_region
          _
        $region28: #{tpu_custom_call.1} parent=11 // pred_fallthru
          _
      $region12: #{tpu_custom_call.1} parent=5 // pred_fallthru
        _
      %p259 = scmp.lt.s32.totalorder %s20, 9
      // Predicated region
      $region29: #{tpu_custom_call.1} parent=5 // pred_check
        %p260 = pneg %p259
      $region30: #{tpu_custom_call.1} parent=5 // pred_check_branch
        %262 = sbr.rel (%p260) target = $region32
      $region31: #{tpu_custom_call.1} parent=5 // pred_region
        // Predicated region
        $region33: #{tpu_custom_call.1} parent=31 // pred_check
          %p263 = pneg %p52
        $region34: #{tpu_custom_call.1} parent=31 // pred_check_branch
          %265 = sbr.rel (%p263) target = $region36
        $region35: #{tpu_custom_call.1} parent=31 // pred_region
          %s266 = sand.u32 %s20, 1
          %s267 = scalar_lea.sflag [#allocation4], %s266
          %s268 = sand.u32 %s42, 1
          %s269 = smul.addr %s268, 32
          %s270 = scalar_lea.vmem [#allocation3], %s269
          %s271 = smul.u32 4, %s27
          %s273 = ssub.s32 512, 512
          %274 = vsyncadd %s267, %s273
          %s275 = smul.addr %s271, 128
          %s276 = scalar_lea.hbm %s0, %s275
          %s277 = sshll.u32 %s270, 4
          %s278 = int_to_ptr.vmem [resolvable:$true] %s277
          %283 = dma.hbm_to_vmem [thread:$0]  %s276, 512, %s278, %s267, 128, 128, 8
        $region36: #{tpu_custom_call.1} parent=31 // pred_fallthru
          _
        // Predicated region
        $region37: #{tpu_custom_call.1} parent=31 // pred_check
          %p284 = pneg %p162
        $region38: #{tpu_custom_call.1} parent=31 // pred_check_branch
          %286 = sbr.rel (%p284) target = $region40
        $region39: #{tpu_custom_call.1} parent=31 // pred_region
          %s287 = sand.u32 %s20, 1
          %s288 = scalar_lea.sflag [#allocation4], %s287
          %s289 = sand.u32 %s152, 1
          %s290 = smul.addr %s289, 128
          %s291 = scalar_lea.vmem [#allocation8], %s290
          %s293 = ssub.s32 2048, 2048
          %294 = vsyncadd %s288, %s293
          %s295 = smul.addr %s28, 128
          %s296 = scalar_lea.hbm %s5, %s295
          %s297 = sshll.u32 %s291, 4
          %s298 = int_to_ptr.vmem [resolvable:$true] %s297
          %303 = dma.hbm_to_vmem [thread:$0]  %s296, 2048, %s298, %s288, 384, 128, 8
        $region40: #{tpu_custom_call.1} parent=31 // pred_fallthru
          _
        // Predicated region
        $region41: #{tpu_custom_call.1} parent=31 // pred_check
          %p304 = pneg %p188
        $region42: #{tpu_custom_call.1} parent=31 // pred_check_branch
          %306 = sbr.rel (%p304) target = $region44
        $region43: #{tpu_custom_call.1} parent=31 // pred_region
          %p307 = scmp.lt.s32.totalorder %s28, 2
          %s308 = scalar_select %p307, %s28, 2
          %s309 = scalar_lea.vmem %s6, %s308
        $region44: #{tpu_custom_call.1} parent=31 // pred_fallthru
          _
      $region32: #{tpu_custom_call.1} parent=5 // pred_fallthru
        _
      %p310 = scmp.le.s32.totalorder 1, %s20
      %p311 = scmp.lt.s32.totalorder %s20, 10
      %p312 = pnand %p310, %p311
      %p313 = pneg %p312
      // Predicated region
      $region45: #{tpu_custom_call.1} parent=5 // pred_check
        _
      $region46: #{tpu_custom_call.1} parent=5 // pred_check_branch
        %315 = sbr.rel (%p312) target = $region48
      $region47: #{tpu_custom_call.1} parent=5 // pred_region
        %s316 = ssub.s32 %s20, 1
        %s317 = sand.u32 %s25, 1
        %s318 = scalar_lea.sflag [#allocation4], %s317
        %s319 = sand.u32 %s45, 1
        %s320 = smul.addr %s319, 32
        %s321 = scalar_lea.vmem [#allocation3], %s320
        // Predicated region
        $region49: #{tpu_custom_call.1} parent=47 // pred_check
          %p322 = pneg %p58
        $region50: #{tpu_custom_call.1} parent=47 // pred_check_branch
          %324 = sbr.rel (%p322) target = $region52
        $region51: #{tpu_custom_call.1} parent=47 // pred_region
          %325 = dma.done %s318, 512
        $region52: #{tpu_custom_call.1} parent=47 // pred_fallthru
          _
        // Predicated region
        $region53: #{tpu_custom_call.1} parent=47 // pred_check
          %p326 = pneg %p79
        $region54: #{tpu_custom_call.1} parent=47 // pred_check_branch
          %328 = sbr.rel (%p326) target = $region56
        $region55: #{tpu_custom_call.1} parent=47 // pred_region
          %329 = dma.done [#allocation7], 2048
        $region56: #{tpu_custom_call.1} parent=47 // pred_fallthru
          _
        %s330 = sand.u32 %s25, 1
        %s331 = scalar_lea.sflag [#allocation4], %s330
        %s332 = sand.u32 %s155, 1
        %s333 = smul.addr %s332, 128
        %s334 = scalar_lea.vmem [#allocation8], %s333
        // Predicated region
        $region57: #{tpu_custom_call.1} parent=47 // pred_check
          %p335 = pneg %p168
        $region58: #{tpu_custom_call.1} parent=47 // pred_check_branch
          %337 = sbr.rel (%p335) target = $region60
        $region59: #{tpu_custom_call.1} parent=47 // pred_region
          %338 = dma.done %s331, 2048
        $region60: #{tpu_custom_call.1} parent=47 // pred_fallthru
          _
        %s339 = sand.u32 %s25, 1
        %s340 = scalar_lea.sflag [#allocation4], %s339
        %s341 = sand.u32 %s45, 1
        %s342 = smul.addr %s341, 32
        %s343 = scalar_lea.vmem [#allocation3], %s342
        %p344 = pneg %p58
        %p345 = pneg %p55
        %p346 = pneg %p79
        %p347 = pneg %p76
        %p348 = pneg %p100
        %p349 = pneg %p97
        %p350 = pneg %p121
        %p351 = pneg %p118
        %p352 = pneg %p142
        %p353 = pneg %p139
        %s354 = sand.u32 %s25, 1
        %s355 = scalar_lea.sflag [#allocation4], %s354
        %s356 = sand.u32 %s155, 1
        %s357 = smul.addr %s356, 128
        %s358 = scalar_lea.vmem [#allocation8], %s357
        %p359 = pneg %p168
        %p360 = pneg %p165
        %p361 = scmp.lt.s32.totalorder %s30, 2
        %s362 = scalar_select %p361, %s30, 2
        %s363 = scalar_lea.vmem %s6, %s362
        %p364 = pneg %p194
        %p365 = pneg %p191
        %p366 = pneg %p222
        %p367 = pneg %p219
        %s368 = sand.u32 %s209, 1
        %s369 = scalar_lea.sflag [#allocation5], %s368
        %s370 = sand.u32 %s209, 1
        %s371 = smul.addr %s370, 32
        %s372 = scalar_lea.vmem [#allocation9], %s371
        %s373 = smul.u32 4, %s29
        %p374 = scmp.lt.s32.totalorder %s30, 2
        %s375 = scalar_select %p374, %s30, 2
        %s376 = scalar_lea.vmem %s6, %s375
        %s377 = smul.u32 4, %s29
        %p378 = scmp.eq.s32.totalorder %s30, 0
        // Predicated region
        $region61: #{tpu_custom_call.1} parent=47 // pred_check
          %p379 = pneg %p378
        $region62: #{tpu_custom_call.1} parent=47 // pred_check_branch
          %381 = sbr.rel (%p379) target = $region64
        $region63: #{tpu_custom_call.1} parent=47 // pred_region
          %v382 = vld [vmem:[%s321] sm:$0xff]
          %v383 = vld [vmem:[%s321 + $0x8] sm:$0xff]
          %v384 = vld [vmem:[%s321 + $0x10] sm:$0xff]
          %v385 = vld [vmem:[%s321 + $0x18] sm:$0xff]
          %v386 = vld [vmem:[#allocation6] sm:$0xff]
          %v387 = vld [vmem:[#allocation6 + $0x8] sm:$0xff]
          %v388 = vld [vmem:[#allocation6 + $0x10] sm:$0xff]
          %v389 = vld [vmem:[#allocation6 + $0x18] sm:$0xff]
          %v390 = vld [vmem:[#allocation6 + $0x20] sm:$0xff]
          %v391 = vld [vmem:[#allocation6 + $0x28] sm:$0xff]
          %v392 = vld [vmem:[#allocation6 + $0x30] sm:$0xff]
          %v393 = vld [vmem:[#allocation6 + $0x38] sm:$0xff]
          %v394 = vld [vmem:[#allocation6 + $0x40] sm:$0xff]
          %v395 = vld [vmem:[#allocation6 + $0x48] sm:$0xff]
          %v396 = vld [vmem:[#allocation6 + $0x50] sm:$0xff]
          %v397 = vld [vmem:[#allocation6 + $0x58] sm:$0xff]
          %v398 = vld [vmem:[#allocation6 + $0x60] sm:$0xff]
          %v399 = vld [vmem:[#allocation6 + $0x68] sm:$0xff]
          %v400 = vld [vmem:[#allocation6 + $0x70] sm:$0xff]
          %v401 = vld [vmem:[#allocation6 + $0x78] sm:$0xff]
          %v402 = vld [vmem:[%s2] sm:$0x1]
          %v404 = vlaneseq
          %v405 = vshrl.u32 %v404, 7
          %v406 = vsub.s32 0, %v405
          %v407 = vrot.slane %v402, %v406
          %409 = vmatprep.subr.mxu0 0.0
          %410 = vmatpush1.msra.mxu0 %v386
          %411 = vmatprep.subr.mxu0 0.0
          %412 = vmatpush1.msra.mxu0 %v387
          %413 = vmatprep.subr.mxu0 0.0
          %414 = vmatpush1.msra.mxu0 %v388
          %415 = vmatprep.subr.mxu0 0.0
          %416 = vmatpush1.msra.mxu0 %v389
          %417 = vmatprep.subr.mxu0 0.0
          %418 = vmatpush1.msra.mxu0 %v390
          %419 = vmatprep.subr.mxu0 0.0
          %420 = vmatpush1.msra.mxu0 %v391
          %421 = vmatprep.subr.mxu0 0.0
          %422 = vmatpush1.msra.mxu0 %v392
          %423 = vmatprep.subr.mxu0 0.0
          %424 = vmatpush1.msra.mxu0 %v393
          %425 = vmatprep.subr.mxu0 0.0
          %426 = vmatpush1.msra.mxu0 %v394
          %427 = vmatprep.subr.mxu0 0.0
          %428 = vmatpush1.msra.mxu0 %v395
          %429 = vmatprep.subr.mxu0 0.0
          %430 = vmatpush1.msra.mxu0 %v396
          %431 = vmatprep.subr.mxu0 0.0
          %432 = vmatpush1.msra.mxu0 %v397
          %433 = vmatprep.subr.mxu0 0.0
          %434 = vmatpush1.msra.mxu0 %v398
          %435 = vmatprep.subr.mxu0 0.0
          %436 = vmatpush1.msra.mxu0 %v399
          %437 = vmatprep.subr.mxu0 0.0
          %438 = vmatpush1.msra.mxu0 %v400
          %439 = vmatprep.subr.mxu0 0.0
          %440 = vmatpush1.msra.mxu0 %v401
          %441 = vmatprep.subr.mxu0 0.0
          %442 = vmatpush1.msra.mxu0 0.0
          %443 = vmatprep.subr.mxu0 0.0
          %444 = vmatpush1.msra.mxu0 0.0
          %445 = vmatprep.subr.mxu0 0.0
          %446 = vmatpush1.msra.mxu0 0.0
          %447 = vmatprep.subr.mxu0 0.0
          %448 = vmatpush1.msra.mxu0 0.0
          %449 = vmatprep.subr.mxu0 0.0
          %450 = vmatpush1.msra.mxu0 0.0
          %451 = vmatprep.subr.mxu0 0.0
          %452 = vmatpush1.msra.mxu0 0.0
          %453 = vmatprep.subr.mxu0 0.0
          %454 = vmatpush1.msra.mxu0 0.0
          %455 = vmatprep.subr.mxu0 0.0
          %456 = vmatpush1.msra.mxu0 0.0
          %457 = vmatprep.subr.mxu0 0.0
          %458 = vmatpush1.msra.mxu0 0.0
          %459 = vmatprep.subr.mxu0 0.0
          %460 = vmatpush1.msra.mxu0 0.0
          %461 = vmatprep.subr.mxu0 0.0
          %462 = vmatpush1.msra.mxu0 0.0
          %463 = vmatprep.subr.mxu0 0.0
          %464 = vmatpush1.msra.mxu0 0.0
          %465 = vmatprep.subr.mxu0 0.0
          %466 = vmatpush1.msra.mxu0 0.0
          %467 = vmatprep.subr.mxu0 0.0
          %468 = vmatpush1.msra.mxu0 0.0
          %469 = vmatprep.subr.mxu0 0.0
          %470 = vmatpush1.msra.mxu0 0.0
          %471 = vmatprep.subr.mxu0 0.0
          %472 = vmatpush1.msra.mxu0 0.0
          %473 = vmatprep.mubr.f32.mxu0 0.0
          %474 = vmatmul.mubr.f32.gmra.mrb[0].mxu0 %v382
          %v475 = vpop.f32.mrb[0].mxu0
          %v476 = vadd.f32 %v407, %v475
          %v477 = vpop.f32.mrb[0].mxu0
          %478 = vmatprep.mubr.f32.mxu0 0.0
          %479 = vmatmul.mubr.f32.gmra.mrb[0].mxu0 %v383
          %v480 = vpop.f32.mrb[0].mxu0
          %v481 = vadd.f32 %v407, %v480
          %v482 = vpop.f32.mrb[0].mxu0
          %483 = vmatprep.mubr.f32.mxu0 0.0
          %484 = vmatmul.mubr.f32.gmra.mrb[0].mxu0 %v384
          %v485 = vpop.f32.mrb[0].mxu0
          %v486 = vadd.f32 %v407, %v485
          %v487 = vpop.f32.mrb[0].mxu0
          %488 = vmatprep.mubr.f32.mxu0 0.0
          %489 = vmatmul.mubr.f32.gmra.mrb[0].mxu0 %v385
          %v490 = vpop.f32.mrb[0].mxu0
          %v491 = vadd.f32 %v407, %v490
          %v492 = vpop.f32.mrb[0].mxu0
          %493 = vdwg.mxu0
          %v494 = vmul.f32 %v476, 0.5
          %v495 = vmul.f32 %v481, 0.5
          %v496 = vmul.f32 %v486, 0.5
          %v497 = vmul.f32 %v491, 0.5
          %v498 = vmul.f32 %v476, 0.70710677
          %v499 = vmul.f32 %v481, 0.70710677
          %v500 = vmul.f32 %v486, 0.70710677
          %v501 = vmul.f32 %v491, 0.70710677
          %v502 = verf.f32.pop %v498
          %v503 = verf.f32.pop %v499
          %v504 = verf.f32.pop %v500
          %v505 = verf.f32.pop %v501
          %v506 = vadd.f32 %v502, 1.0
          %v507 = vadd.f32 %v503, 1.0
          %v508 = vadd.f32 %v504, 1.0
          %v509 = vadd.f32 %v505, 1.0
          %v510 = vmul.f32 %v494, %v506
          %v511 = vmul.f32 %v495, %v507
          %v512 = vmul.f32 %v496, %v508
          %v513 = vmul.f32 %v497, %v509
          %514 = vadd.xlane.f32.xlu0 %v510
          %v515 = vpop.xlane.xlu0 %514
          %516 = vadd.xlane.f32.xlu0 %v511
          %v517 = vpop.xlane.xlu0 %516
          %518 = vadd.xlane.f32.xlu0 %v512
          %v519 = vpop.xlane.xlu0 %518
          %520 = vadd.xlane.f32.xlu0 %v513
          %v521 = vpop.xlane.xlu0 %520
          %v522 = vrcp.pop 128.0
          %v523 = vmul.f32 %v515, %v522
          %v524 = vmul.f32 %v517, %v522
          %v525 = vmul.f32 %v519, %v522
          %v526 = vmul.f32 %v521, %v522
          %v527 = vsub.f32 %v510, %v523
          %v528 = vsub.f32 %v511, %v524
          %v529 = vsub.f32 %v512, %v525
          %v530 = vsub.f32 %v513, %v526
          %v531 = vmul.f32 %v527, %v527
          %v532 = vmul.f32 %v528, %v528
          %v533 = vmul.f32 %v529, %v529
          %v534 = vmul.f32 %v530, %v530
          %535 = vadd.xlane.f32.xlu0 %v531
          %v536 = vpop.xlane.xlu0 %535
          %537 = vadd.xlane.f32.xlu0 %v532
          %v538 = vpop.xlane.xlu0 %537
          %539 = vadd.xlane.f32.xlu0 %v533
          %v540 = vpop.xlane.xlu0 %539
          %541 = vadd.xlane.f32.xlu0 %v534
          %v542 = vpop.xlane.xlu0 %541
          %v543 = vmul.f32 %v536, %v522
          %v544 = vmul.f32 %v538, %v522
          %v545 = vmul.f32 %v540, %v522
          %v546 = vmul.f32 %v542, %v522
          %v547 = vadd.f32 %v543, 1e-12
          %v548 = vadd.f32 %v544, 1e-12
          %v549 = vadd.f32 %v545, 1e-12
          %v550 = vadd.f32 %v546, 1e-12
          %v551 = vrsqrt.pop %v547
          %v552 = vrsqrt.pop %v548
          %v553 = vrsqrt.pop %v549
          %v554 = vrsqrt.pop %v550
          %v555 = vmul.f32 %v527, %v551
          %v556 = vmul.f32 %v528, %v552
          %v557 = vmul.f32 %v529, %v553
          %v558 = vmul.f32 %v530, %v554
          %v559 = vld [vmem:[%s3] sm:$0x1]
          %v561 = vlaneseq
          %v562 = vshrl.u32 %v561, 7
          %v563 = vsub.s32 0, %v562
          %v564 = vrot.slane %v559, %v563
          %v566 = vmul.f32 %v555, %v564
          %v567 = vmul.f32 %v556, %v564
          %v568 = vmul.f32 %v557, %v564
          %v569 = vmul.f32 %v558, %v564
          %v570 = vld [vmem:[%s4] sm:$0x1]
          %v572 = vlaneseq
          %v573 = vshrl.u32 %v572, 7
          %v574 = vsub.s32 0, %v573
          %v575 = vrot.slane %v570, %v574
          %v577 = vadd.f32 %v566, %v575
          %v578 = vadd.f32 %v567, %v575
          %v579 = vadd.f32 %v568, %v575
          %v580 = vadd.f32 %v569, %v575
          %581 = vst [vmem:[#allocation2] sm:$0xff] %v577
          %582 = vst [vmem:[#allocation2 + $0x8] sm:$0xff] %v578
          %583 = vst [vmem:[#allocation2 + $0x10] sm:$0xff] %v579
          %584 = vst [vmem:[#allocation2 + $0x18] sm:$0xff] %v580
        $region64: #{tpu_custom_call.1} parent=47 // pred_fallthru
          _
        %v585 = vld [vmem:[#allocation2] sm:$0xff]
        %v586 = vld [vmem:[#allocation2 + $0x8] sm:$0xff]
        %v587 = vld [vmem:[#allocation2 + $0x10] sm:$0xff]
        %v588 = vld [vmem:[#allocation2 + $0x18] sm:$0xff]
        %v589 = vld [vmem:[%s334] sm:$0xff]
        %v590 = vld [vmem:[%s334 + $0x8] sm:$0xff]
        %v591 = vld [vmem:[%s334 + $0x10] sm:$0xff]
        %v592 = vld [vmem:[%s334 + $0x18] sm:$0xff]
        %v593 = vld [vmem:[%s334 + $0x20] sm:$0xff]
        %v594 = vld [vmem:[%s334 + $0x28] sm:$0xff]
        %v595 = vld [vmem:[%s334 + $0x30] sm:$0xff]
        %v596 = vld [vmem:[%s334 + $0x38] sm:$0xff]
        %v597 = vld [vmem:[%s334 + $0x40] sm:$0xff]
        %v598 = vld [vmem:[%s334 + $0x48] sm:$0xff]
        %v599 = vld [vmem:[%s334 + $0x50] sm:$0xff]
        %v600 = vld [vmem:[%s334 + $0x58] sm:$0xff]
        %v601 = vld [vmem:[%s334 + $0x60] sm:$0xff]
        %v602 = vld [vmem:[%s334 + $0x68] sm:$0xff]
        %v603 = vld [vmem:[%s334 + $0x70] sm:$0xff]
        %v604 = vld [vmem:[%s334 + $0x78] sm:$0xff]
        %v605 = vld [vmem:[%s376] sm:$0x1]
        %v607 = vlaneseq
        %v608 = vshrl.u32 %v607, 7
        %v609 = vsub.s32 0, %v608
        %v610 = vrot.slane %v605, %v609
        %612 = vmatprep.subr.mxu0 0.0
        %613 = vmatpush1.msra.mxu0 %v589
        %614 = vmatprep.subr.mxu0 0.0
        %615 = vmatpush1.msra.mxu0 %v590
        %616 = vmatprep.subr.mxu0 0.0
        %617 = vmatpush1.msra.mxu0 %v591
        %618 = vmatprep.subr.mxu0 0.0
        %619 = vmatpush1.msra.mxu0 %v592
        %620 = vmatprep.subr.mxu0 0.0
        %621 = vmatpush1.msra.mxu0 %v593
        %622 = vmatprep.subr.mxu0 0.0
        %623 = vmatpush1.msra.mxu0 %v594
        %624 = vmatprep.subr.mxu0 0.0
        %625 = vmatpush1.msra.mxu0 %v595
        %626 = vmatprep.subr.mxu0 0.0
        %627 = vmatpush1.msra.mxu0 %v596
        %628 = vmatprep.subr.mxu0 0.0
        %629 = vmatpush1.msra.mxu0 %v597
        %630 = vmatprep.subr.mxu0 0.0
        %631 = vmatpush1.msra.mxu0 %v598
        %632 = vmatprep.subr.mxu0 0.0
        %633 = vmatpush1.msra.mxu0 %v599
        %634 = vmatprep.subr.mxu0 0.0
        %635 = vmatpush1.msra.mxu0 %v600
        %636 = vmatprep.subr.mxu0 0.0
        %637 = vmatpush1.msra.mxu0 %v601
        %638 = vmatprep.subr.mxu0 0.0
        %639 = vmatpush1.msra.mxu0 %v602
        %640 = vmatprep.subr.mxu0 0.0
        %641 = vmatpush1.msra.mxu0 %v603
        %642 = vmatprep.subr.mxu0 0.0
        %643 = vmatpush1.msra.mxu0 %v604
        %644 = vmatprep.subr.mxu0 0.0
        %645 = vmatpush1.msra.mxu0 0.0
        %646 = vmatprep.subr.mxu0 0.0
        %647 = vmatpush1.msra.mxu0 0.0
        %648 = vmatprep.subr.mxu0 0.0
        %649 = vmatpush1.msra.mxu0 0.0
        %650 = vmatprep.subr.mxu0 0.0
        %651 = vmatpush1.msra.mxu0 0.0
        %652 = vmatprep.subr.mxu0 0.0
        %653 = vmatpush1.msra.mxu0 0.0
        %654 = vmatprep.subr.mxu0 0.0
        %655 = vmatpush1.msra.mxu0 0.0
        %656 = vmatprep.subr.mxu0 0.0
        %657 = vmatpush1.msra.mxu0 0.0
        %658 = vmatprep.subr.mxu0 0.0
        %659 = vmatpush1.msra.mxu0 0.0
        %660 = vmatprep.subr.mxu0 0.0
        %661 = vmatpush1.msra.mxu0 0.0
        %662 = vmatprep.subr.mxu0 0.0
        %663 = vmatpush1.msra.mxu0 0.0
        %664 = vmatprep.subr.mxu0 0.0
        %665 = vmatpush1.msra.mxu0 0.0
        %666 = vmatprep.subr.mxu0 0.0
        %667 = vmatpush1.msra.mxu0 0.0
        %668 = vmatprep.subr.mxu0 0.0
        %669 = vmatpush1.msra.mxu0 0.0
        %670 = vmatprep.subr.mxu0 0.0
        %671 = vmatpush1.msra.mxu0 0.0
        %672 = vmatprep.subr.mxu0 0.0
        %673 = vmatpush1.msra.mxu0 0.0
        %674 = vmatprep.subr.mxu0 0.0
        %675 = vmatpush1.msra.mxu0 0.0
        %676 = vmatprep.mubr.f32.mxu0 0.0
        %677 = vmatmul.mubr.f32.gmra.mrb[0].mxu0 %v585
        %v678 = vpop.f32.mrb[0].mxu0
        %v679 = vadd.f32 %v610, %v678
        %v680 = vpop.f32.mrb[0].mxu0
        %681 = vmatprep.mubr.f32.mxu0 0.0
        %682 = vmatmul.mubr.f32.gmra.mrb[0].mxu0 %v586
        %v683 = vpop.f32.mrb[0].mxu0
        %v684 = vadd.f32 %v610, %v683
        %v685 = vpop.f32.mrb[0].mxu0
        %686 = vmatprep.mubr.f32.mxu0 0.0
        %687 = vmatmul.mubr.f32.gmra.mrb[0].mxu0 %v587
        %v688 = vpop.f32.mrb[0].mxu0
        %v689 = vadd.f32 %v610, %v688
        %v690 = vpop.f32.mrb[0].mxu0
        %691 = vmatprep.mubr.f32.mxu0 0.0
        %692 = vmatmul.mubr.f32.gmra.mrb[0].mxu0 %v588
        %v693 = vpop.f32.mrb[0].mxu0
        %v694 = vadd.f32 %v610, %v693
        %v695 = vpop.f32.mrb[0].mxu0
        %696 = vdwg.mxu0
        %697 = vst [vmem:[%s372] sm:$0xff] %v679
        %698 = vst [vmem:[%s372 + $0x8] sm:$0xff] %v684
        %699 = vst [vmem:[%s372 + $0x10] sm:$0xff] %v689
        %700 = vst [vmem:[%s372 + $0x18] sm:$0xff] %v694
        %s701 = sand.u32 %s209, 1
        %s702 = scalar_lea.sflag [#allocation5], %s701
        %s703 = sand.u32 %s209, 1
        %s704 = smul.addr %s703, 32
        %s705 = scalar_lea.vmem [#allocation9], %s704
        // Predicated region
        $region65: #{tpu_custom_call.1} parent=47 // pred_check
          %p706 = pneg %p219
        $region66: #{tpu_custom_call.1} parent=47 // pred_check_branch
          %708 = sbr.rel (%p706) target = $region68
        $region67: #{tpu_custom_call.1} parent=47 // pred_region
          %s709 = smul.u32 4, %s29
          %s711 = ssub.s32 512, 512
          %712 = vsyncadd %s702, %s711
          %s713 = smul.addr %s709, 3
          %s714 = sadd.s32 %s30, %s713
          %s715 = smul.addr %s714, 128
          %s716 = scalar_lea.hbm %s7, %s715
          %s717 = sshll.u32 %s705, 4
          %s718 = int_to_ptr.vmem [resolvable:$true] %s717
          %723 = dma.vmem_to_hbm [thread:$0]  %s718, 512, %s716, %s702, 128, 384, 8
        $region68: #{tpu_custom_call.1} parent=47 // pred_fallthru
          _
      $region48: #{tpu_custom_call.1} parent=5 // pred_fallthru
        _
      %p724 = scmp.le.s32.totalorder 2, %s20
      // Predicated region
      $region69: #{tpu_custom_call.1} parent=5 // pred_check
        %p725 = pneg %p724
      $region70: #{tpu_custom_call.1} parent=5 // pred_check_branch
        %727 = sbr.rel (%p725) target = $region72
      $region71: #{tpu_custom_call.1} parent=5 // pred_region
        %s728 = ssub.s32 %s20, 2
        // Predicated region
        $region73: #{tpu_custom_call.1} parent=71 // pred_check
          %p729 = pneg %p225
        $region74: #{tpu_custom_call.1} parent=71 // pred_check_branch
          %731 = sbr.rel (%p729) target = $region76
        $region75: #{tpu_custom_call.1} parent=71 // pred_region
          %s732 = sand.u32 %s210, 1
          %s733 = scalar_lea.sflag [#allocation5], %s732
          %s734 = sand.u32 %s210, 1
          %s735 = smul.addr %s734, 32
          %s736 = scalar_lea.vmem [#allocation9], %s735
          %737 = dma.done %s733, 512
        $region76: #{tpu_custom_call.1} parent=71 // pred_fallthru
          _
      $region72: #{tpu_custom_call.1} parent=5 // pred_fallthru
        _
    $region6: #{tpu_custom_call.1} parent=1 // loop_footer
      %s24 = sadd.s32 1, %s20
    $region7: #{tpu_custom_call.1} parent=1 // loop_footer_branch
      %19 = sbr.rel target = $region3
    $region8: #{tpu_custom_call.1} parent=1 // loop_exit
      _
    %738 = vsyncpa [#allocation4], 1
    %s739 = scalar_lea.sflag [#allocation4], 1
    %740 = vsyncpa %s739, 1
    %741 = vsyncpa [#allocation7], 1
    %742 = vsyncpa [#allocation5], 1
    %s743 = scalar_lea.sflag [#allocation5], 1
    %744 = vsyncpa %s743, 1

</llo_original>
